<compile_context>
chip_gen: v7x
topology: tpu7x:2x2x1
jax: 0.10.0
libtpu: 0.0.40
codegen_flags: <defaults>
</compile_context>

<pallas_src>
import functools

import jax
import jax.numpy as jnp
from jax.experimental import pallas as pl
from jax.experimental.pallas import tpu as pltpu


def _round_up(x: int, m: int) -> int:
    return (x + m - 1) // m * m


def _round_down(x: int, m: int) -> int:
    return x // m * m


def _cdiv(a: int, b: int) -> int:
    return (a + b - 1) // b


# ---------------------------------------------------------------------------
# Kernel variant A: whole spatial extent in one block -> single pass, no scratch
# ---------------------------------------------------------------------------
def _make_single_pass_kernel(inv_s: float):
    def kernel(x_ref, o_ref):
        x = x_ref[...].astype(jnp.float32)                       # (TR, S)
        o_ref[...] = (jnp.sum(x, axis=1, keepdims=True) * inv_s).astype(o_ref.dtype)

    return kernel


# ---------------------------------------------------------------------------
# Kernel variant B: spatial extent tiled -> accumulate over last grid axis,
# masking the (possibly partial) final spatial tile in-kernel.
# ---------------------------------------------------------------------------
def _make_accum_kernel(inv_s: float, n_s: int, s_rem: int):
    def kernel(x_ref, o_ref, acc_ref):
        s = pl.program_id(1)

        @pl.when(s == 0)
        def _init():
            acc_ref[...] = jnp.zeros_like(acc_ref)

        x = x_ref[...].astype(jnp.float32)                       # (TR, TS)
        if s_rem:  # compile-time: final tile only partially valid
            lane = jax.lax.broadcasted_iota(jnp.int32, x.shape, 1)
            x = jnp.where((s < n_s - 1) | (lane < s_rem), x, 0.0)
        acc_ref[...] += jnp.sum(x, axis=1, keepdims=True)

        @pl.when(s == n_s - 1)
        def _finalize():
            o_ref[...] = (acc_ref[...] * inv_s).astype(o_ref.dtype)

    return kernel


# ---------------------------------------------------------------------------
# Wrapper
# ---------------------------------------------------------------------------
@functools.partial(jax.jit, static_argnames=("block_bytes",))
def global_avg_flatten(x_nchw, *, block_bytes: int = 4 * 2**20):
    """Global average pool to (1,1) + flatten.  x_nchw: (N, C, H, W) -> (N, C)."""
    N, C, H, W = x_nchw.shape
    S = H * W
    NC = N * C
    out_dtype = x_nchw.dtype

    # Contiguous collapse NCHW -> (N*C, S): a free view, no transpose/pad pass.
    x = x_nchw.reshape(NC, S)

    itemsize = jnp.dtype(x.dtype).itemsize
    acc_itemsize = max(itemsize, 4)              # kernel upcasts to f32
    s_lanes = _round_up(S, 128)                  # VMEM lane footprint per row
    block_bytes = max(int(block_bytes), 4096)

    # --- choose spatial tiling ------------------------------------------------
    if 8 * s_lanes * acc_itemsize <= block_bytes:
        ts, n_s = S, 1                           # whole spatial extent per block
    else:
        ts = max(128, _round_down(block_bytes // (8 * acc_itemsize), 128))
        n_s = _cdiv(S, ts)
        if n_s == 1:
            ts = S
    s_rem = S % ts if n_s > 1 else 0

    # --- choose row tiling ------------------------------------------------------
    if n_s == 1:
        tr = max(8, min(_round_up(NC, 8),
                        _round_down(block_bytes // (s_lanes * acc_itemsize), 8)))
    else:
        tr = 8
    n_r = _cdiv(NC, tr)

    inv_s = 1.0 / float(S)

    # --- VMEM budget / cost hints ----------------------------------------------
    ts_lanes = _round_up(ts, 128)
    in_block = tr * ts_lanes * itemsize
    f32_tmp = tr * ts_lanes * 4
    out_block = tr * 128 * jnp.dtype(out_dtype).itemsize
    vmem_limit = int(min(64 * 2**20,
                         max(16 * 2**20,
                             3 * in_block + 2 * f32_tmp + 4 * out_block + (2 << 20))))

    cost = pl.CostEstimate(
        flops=NC * S + NC,
        transcendentals=0,
        bytes_accessed=NC * S * itemsize + NC * jnp.dtype(out_dtype).itemsize,
    )

    if n_s == 1:
        kernel = _make_single_pass_kernel(inv_s)
        grid = (n_r,)
        in_specs = [pl.BlockSpec((tr, ts), lambda i: (i, 0))]
        out_specs = pl.BlockSpec((tr, 1), lambda i: (i, 0))
        scratch = []
        dims = ("parallel",)
    else:
        kernel = _make_accum_kernel(inv_s, n_s, s_rem)
        grid = (n_r, n_s)
        in_specs = [pl.BlockSpec((tr, ts), lambda i, s: (i, s))]
        out_specs = pl.BlockSpec((tr, 1), lambda i, s: (i, 0))
        scratch = [pltpu.VMEM((tr, 1), jnp.float32)]
        dims = ("parallel", "arbitrary")

    out = pl.pallas_call(
        kernel,
        out_shape=jax.ShapeDtypeStruct((NC, 1), out_dtype),
        grid_spec=pltpu.PrefetchScalarGridSpec(
            num_scalar_prefetch=0,
            grid=grid,
            in_specs=in_specs,
            out_specs=out_specs,
            scratch_shapes=scratch,
        ),
        compiler_params=pltpu.CompilerParams(
            dimension_semantics=dims,
            vmem_limit_bytes=vmem_limit,
        ),
        cost_estimate=cost,
    )(x)

    # Flatten (N*C, 1) -> (N, C), matching out.view(out.size(0), -1).
    return out.reshape(N, C)


# ---------------------------------------------------------------------------
# Demo / correctness checks
# ---------------------------------------------------------------------------
if __name__ == "__main__":
    key = jax.random.PRNGKey(0)

    # Primary shape from the module spec.
    x = jax.random.normal(key, (2, 4, 16, 16), jnp.float32)
    ref = jnp.mean(x, axis=(2, 3))

    out = global_avg_flatten(x)                       # single-pass variant
    jax.block_until_ready(out)
    assert out.shape == (2, 4)
    assert bool(jnp.all(jnp.isfinite(out)))
    assert bool(jnp.allclose(out, ref, atol=1e-5, rtol=1e-5))

    # Force the multi-tile spatial-reduction variant (accumulator path).
    out_b = global_avg_flatten(x, block_bytes=4096)
    jax.block_until_ready(out_b)
    assert bool(jnp.allclose(out_b, ref, atol=1e-5, rtol=1e-5))

    # Odd sizes: S not a multiple of 128 and N*C not a multiple of 8
    # (exercises partial row blocks and the masked spatial tail tile).
    x2 = jax.random.normal(jax.random.fold_in(key, 1), (2, 7, 12, 12), jnp.float32)
    ref2 = jnp.mean(x2, axis=(2, 3))
    out2a = global_avg_flatten(x2)                    # single-pass, full-S block
    out2b = global_avg_flatten(x2, block_bytes=4096)  # tiled S, masked tail
    jax.block_until_ready(out2b)
    assert bool(jnp.allclose(out2a, ref2, atol=1e-5, rtol=1e-5))
    assert bool(jnp.allclose(out2b, ref2, atol=1e-5, rtol=1e-5))

    print("KERNEL_OK")
</pallas_src>

<mosaic_0001>
module attributes {stable_mosaic.version = 11 : i64} {
  func.func @kernel(%arg0: i32, %arg1: memref<8x256xf32, #tpu.memory_space<vmem>>, %arg2: memref<8x1xf32, #tpu.memory_space<vmem>>) attributes {dimension_semantics = [#tpu.dimension_semantics<parallel>], iteration_bounds = array<i64: 1>, scalar_prefetch = 0 : i64, scratch_operands = 0 : i64, tpu.core_type = #tpu.core_type<tc>, window_params = [{transform_indices = @transform_0, window_bounds = array<i64: 8, 256>}, {transform_indices = @transform_1, window_bounds = array<i64: 8, 1>}]} {
    %c0 = arith.constant 0 : index
    %c0_0 = arith.constant 0 : index
    %0 = vector.load %arg1[%c0, %c0_0] : memref<8x256xf32, #tpu.memory_space<vmem>>, vector<8x256xf32>
    %cst = arith.constant dense<0.000000e+00> : vector<8xf32>
    %1 = vector.multi_reduction <add>, %0, %cst [1] : vector<8x256xf32> to vector<8xf32>
    %2 = vector.shape_cast %1 : vector<8xf32> to vector<8x1xf32>
    %cst_1 = arith.constant 3.906250e-03 : f32
    %3 = vector.broadcast %cst_1 : f32 to vector<8x1xf32>
    %4 = arith.mulf %2, %3 : vector<8x1xf32>
    %c0_2 = arith.constant 0 : index
    %c0_3 = arith.constant 0 : index
    %5 = vector.load %arg2[%c0_2, %c0_3] : memref<8x1xf32, #tpu.memory_space<vmem>>, vector<8x1xf32>
    tpu.vector_store %arg2[%c0_2, %c0_3], %4 {strides = array<i32>} : memref<8x1xf32, #tpu.memory_space<vmem>>, vector<8x1xf32>,
    return
  }
  func.func @transform_0(%arg0: i32) -> (i32, i32) {
    %c0_i32 = arith.constant 0 : i32
    %c0_i32_0 = arith.constant 0 : i32
    return %arg0, %c0_i32 : i32, i32
  }
  func.func @transform_1(%arg0: i32) -> (i32, i32) {
    %c0_i32 = arith.constant 0 : i32
    %c0_i32_0 = arith.constant 0 : i32
    return %arg0, %c0_i32 : i32, i32
  }
}

</mosaic_0001>

<llo_original>
// kernel: global_avg_flatten.1
$region0: #{global_avg_flatten.1}
  #allocation0 [shape = 'u32[]', space=smem, size = 0x4, offset = 0x4, fixed_abs, tag = 'smem constant byte address 0x4 - core index']
  #allocation1 [shape = 'u32[144,128]{1,0:T(1,128)}', space=vmem, size = 0x12000, scoped, tag = 'internal scratch']
  %s0 = inlined_call_operand.vmem [shape: f32[8,256], index: 0, kind: input, shape index: {}]
  %s1 = inlined_call_operand.vmem [shape: f32[8,1], index: 1, kind: output, shape index: {}]
  %s2 = sld [smem:[#allocation0]]
  $region14: #{global_avg_flatten.1} parent=0
    _
  %s4 = ssub.s32 1, %s2
  %s5 = scalar_select 0, %s4, %s2
  // Predicated region
  $region2: #{global_avg_flatten.1} parent=0 // pred_check
    _
  $region3: #{global_avg_flatten.1} parent=0 // pred_check_branch
    %7 = sbr.rel (0) target = $region5
  $region4: #{global_avg_flatten.1} parent=0 // pred_region
    _
  $region5: #{global_avg_flatten.1} parent=0 // pred_fallthru
    _
  %v8 = vld [vmem:[%s0] sm:$0xff]
  %v9 = vld [vmem:[%s0 + $0x8] sm:$0xff]
  %v10 = vadd.f32 %v8, %v9
  %11 = vadd.xlane.f32.xlu0 %v10
  %v12 = vpop.xlane.xlu0 %11
  %v13 = vmul.f32 %v12, 0.00390625
  %vm14 = vcmask 7168
  %15 = vst.msk [vmem:[%s1] sm:$0xff] %vm14, %v13
  // Predicated region
  $region6: #{global_avg_flatten.1} parent=0 // pred_check
    _
  $region7: #{global_avg_flatten.1} parent=0 // pred_check_branch
    %17 = sbr.rel (0) target = $region9
  $region8: #{global_avg_flatten.1} parent=0 // pred_region
    _
  $region9: #{global_avg_flatten.1} parent=0 // pred_fallthru
    _
  // Predicated region
  $region10: #{global_avg_flatten.1} parent=0 // pred_check
    _
  $region11: #{global_avg_flatten.1} parent=0 // pred_check_branch
    %19 = sbr.rel (0) target = $region13
  $region12: #{global_avg_flatten.1} parent=0 // pred_region
    _
  $region13: #{global_avg_flatten.1} parent=0 // pred_fallthru
    _

</llo_original>
